<compile_context>
chip_gen: v5e
topology: v5e:2x2
jax: 0.10.0
libtpu: 0.0.40
codegen_flags: <defaults>
</compile_context>

<pallas_src>
import functools

import jax
import jax.numpy as jnp
from jax import lax
from jax.experimental import pallas as pl
from jax.experimental.pallas import tpu as pltpu

# --- synthetic MSAVocab constants (module's __init__ only needs vocab_size) ---
MSA_VOCAB_SIZE = 32
MSA_MASK_IDX = 31          # index of MSA_MASKED_SYMBOL in the vocab


def _masked_msa_kernel(x_ref, t_ref, w_ref, b_ref, ce_ref, n_ref, acc_ref, *,
                       mask_idx, n_rows):
    c = pl.program_id(0)                 # megacore (parallel) axis
    j = pl.program_id(1)                 # row-tile (reduction) axis
    n_j = pl.num_programs(1)

    tm = x_ref.shape[0]

    @pl.when(j == 0)
    def _():
        acc_ref[0] = 0.0                 # running masked-CE sum (this core)
        acc_ref[1] = 0.0                 # running mask count    (this core)

    # Linear: logits = x @ W + b  (MXU, f32 accumulate; no explicit upcast).
    logits = jnp.dot(x_ref[...], w_ref[...],
                     preferred_element_type=jnp.float32)
    logits = logits + b_ref[...].astype(jnp.float32)          # [TM, V]

    # Softmax (the nn.Sequential's Softmax(dim=-1)); approx reciprocal -> EUP.
    z = logits - jnp.max(logits, axis=-1, keepdims=True)
    ez = jnp.exp(z)
    p = ez * pl.reciprocal(jnp.sum(ez, axis=-1, keepdims=True), approx=True)

    # F.cross_entropy applies log_softmax to its input (already probabilities).
    # p is in (0, 1], so the max-shift is redundant: logp = p - log(sum(exp p)).
    logz = jnp.log(jnp.sum(jnp.exp(p), axis=-1, keepdims=True))   # [TM, 1]

    # Fused CE with (soft/one-hot) targets: -sum(t*logp) = sum(t)*logz - sum(t*p)
    t = t_ref[...].astype(jnp.float32)                            # [TM, V]
    tp = jnp.sum(t * p, axis=-1, keepdims=True)                   # [TM, 1]
    tsum = jnp.sum(t, axis=-1, keepdims=True)                     # [TM, 1] (=1)
    ce = tsum * logz - tp                                         # [TM, 1]

    # Row selection: masked symbol AND a valid (non-pad / non-overhang) row.
    # jnp.where (not a float multiply) so garbage tail rows can't inject NaN.
    tile_id = c * n_j + j
    rows = tile_id * tm + lax.broadcasted_iota(jnp.int32, (tm, 1), 0)
    valid = rows < n_rows
    is_masked = t[:, mask_idx:mask_idx + 1] == 1.0                # [TM, 1]
    sel = jnp.logical_and(is_masked, valid)                       # [TM, 1]

    ce_part = jnp.sum(jnp.where(sel, ce, 0.0))                    # scalar
    n_part = jnp.sum(jnp.where(sel, 1.0, 0.0))                    # scalar

    acc_ref[0] += ce_part
    acc_ref[1] += n_part

    @pl.when(j == n_j - 1)
    def _():
        # Lane-dense one-shot write of the per-core partials (value replicated
        # across the (8,128) block; the wrapper reads element [0,0]).
        ce_ref[...] = jnp.full(ce_ref.shape, acc_ref[0], dtype=ce_ref.dtype)
        n_ref[...] = jnp.full(n_ref.shape, acc_ref[1], dtype=n_ref.dtype)


def _tpu_config():
    """Returns (num_tensorcores_to_split_over, x_tile_budget_bytes, vmem_limit_bytes)."""
    kind = ""
    try:
        kind = jax.devices()[0].device_kind.lower()
    except Exception:
        pass
    if "v7" in kind:
        # 2 TCs/chip, 64 MiB physical VMEM/TC: modest tiles, explicit limit < 64 MiB.
        return 2, 7 * 2**20, 48 * 2**20
    if "v6" in kind:
        # 1 TC, 128 MiB physical VMEM (32 MiB scoped default): big tiles + raised limit.
        return 1, 24 * 2**20, 100 * 2**20
    if "v5" in kind:
        # 1 TC, 128 MiB physical VMEM (16 MiB scoped default): explicit raised limit.
        return 1, 16 * 2**20, 80 * 2**20
    # Unknown chip: conservative sizing that also fits a 64 MiB-VMEM part.
    return 1, 6 * 2**20, 48 * 2**20


def masked_msa_head(msa_rep, true_msa, weight, bias, *, tile_m=None):
    """msa_rep: [S, R, D], true_msa: [S, R, V] one-hot,
    weight: [D, V], bias: [V].  Returns scalar L_msa (f32)."""
    S, R, D = msa_rep.shape
    V = true_msa.shape[-1]
    M = S * R

    x = msa_rep.reshape(M, D)
    t = true_msa.reshape(M, V)

    num_cores, x_budget, vmem_limit = _tpu_config()

    def round_up(a, b):
        return (a + b - 1) // b * b

    # Row tile: multiple of 8, no bigger than the (rounded) row count, sized so
    # the double-buffered x/t tiles plus [tm,V] f32 intermediates fit the
    # per-generation budget.
    bytes_per_row = D * x.dtype.itemsize + V * t.dtype.itemsize + 4 * V * 4
    tm_cap = max(8, (x_budget // bytes_per_row) // 8 * 8)
    tm = min(round_up(M, 8), tm_cap)
    if tile_m is not None:
        tm = min(tm, max(8, round_up(tile_m, 8)))

    num_tiles = pl.cdiv(M, tm)
    nc = max(1, min(num_cores, num_tiles))        # megacore split (v7x only)
    tiles_per_core = pl.cdiv(num_tiles, nc)

    def row_map(c, j):
        # Clamp so overhang tiles of the last core stay in bounds; their rows
        # are discarded in-kernel by the `rows < n_rows` check.
        return (jnp.minimum(c * tiles_per_core + j, num_tiles - 1), 0)

    kernel = functools.partial(_masked_msa_kernel,
                               mask_idx=MSA_MASK_IDX, n_rows=M)

    ce_part, n_part = pl.pallas_call(
        kernel,
        out_shape=(
            jax.ShapeDtypeStruct((nc, 8, 128), jnp.float32),  # per-core CE sum
            jax.ShapeDtypeStruct((nc, 8, 128), jnp.float32),  # per-core mask count
        ),
        grid_spec=pltpu.PrefetchScalarGridSpec(
            num_scalar_prefetch=0,
            grid=(nc, tiles_per_core),
            in_specs=[
                pl.BlockSpec((tm, D), row_map),               # msa_rep rows
                pl.BlockSpec((tm, V), row_map),               # one-hot targets
                pl.BlockSpec((D, V), lambda c, j: (0, 0)),    # weight (resident)
                pl.BlockSpec((1, V), lambda c, j: (0, 0)),    # bias (resident)
            ],
            out_specs=(
                pl.BlockSpec((1, 8, 128), lambda c, j: (c, 0, 0)),
                pl.BlockSpec((1, 8, 128), lambda c, j: (c, 0, 0)),
            ),
            scratch_shapes=[pltpu.SMEM((2,), jnp.float32)],   # per-core scalars
        ),
        compiler_params=pltpu.CompilerParams(
            dimension_semantics=("parallel", "arbitrary"),
            vmem_limit_bytes=int(vmem_limit)),
    )(x, t, weight, bias.reshape(1, V))

    ce_sum = jnp.sum(ce_part[:, 0, 0])
    n_mask = jnp.sum(n_part[:, 0, 0])
    # Like the PyTorch module, result is NaN/Inf if no position is masked.
    return -(ce_sum / n_mask)


def _reference(msa_rep, true_msa, weight, bias):
    logits = jnp.einsum("srd,dv->srv", msa_rep, weight) + bias
    p = jax.nn.softmax(logits, axis=-1)
    logp = jax.nn.log_softmax(p, axis=-1)
    ce = -jnp.sum(true_msa * logp, axis=-1)
    mask = (true_msa[..., MSA_MASK_IDX] == 1.0).astype(jnp.float32)
    return -jnp.sum(mask * ce) / jnp.sum(mask)


if __name__ == "__main__":
    key = jax.random.PRNGKey(0)
    k_rep, k_cls, k_w, k_b = jax.random.split(key, 4)

    n_seq, n_res, msa_dim = 8, 16, 32
    vocab = MSA_VOCAB_SIZE

    msa_rep = jax.random.normal(k_rep, (n_seq, n_res, msa_dim), jnp.float32)

    # one-hot true MSA; force some positions to the masked symbol
    classes = jax.random.randint(k_cls, (n_seq, n_res), 0, vocab)
    classes = classes.at[:, ::4].set(MSA_MASK_IDX)   # deterministic masked set
    true_msa = jax.nn.one_hot(classes, vocab, dtype=jnp.float32)

    # deterministic Linear(msa_dim, vocab) parameters
    weight = jax.random.normal(k_w, (msa_dim, vocab), jnp.float32) * 0.1
    bias = jax.random.normal(k_b, (vocab,), jnp.float32) * 0.1

    loss = masked_msa_head(msa_rep, true_msa, weight, bias)
    loss = jax.block_until_ready(loss)

    ref = _reference(msa_rep, true_msa, weight, bias)
    # approx=True reciprocal changes low-order bits only; 1e-3 is comfortable.
    assert jnp.allclose(loss, ref, atol=1e-3, rtol=1e-3), (loss, ref)

    print("KERNEL_OK")
</pallas_src>

<mosaic_0001>
module attributes {stable_mosaic.version = 11 : i64} {
  func.func @_masked_msa_kernel(%arg0: i32, %arg1: i32, %arg2: memref<128x32xf32, #tpu.memory_space<vmem>>, %arg3: memref<128x32xf32, #tpu.memory_space<vmem>>, %arg4: memref<32x32xf32, #tpu.memory_space<vmem>>, %arg5: memref<1x32xf32, #tpu.memory_space<vmem>>, %arg6: memref<1x8x128xf32, #tpu.memory_space<vmem>>, %arg7: memref<1x8x128xf32, #tpu.memory_space<vmem>>, %arg8: memref<2xf32, #tpu.memory_space<smem>>) attributes {dimension_semantics = [#tpu.dimension_semantics<parallel>, #tpu.dimension_semantics<arbitrary>], iteration_bounds = array<i64: 1, 1>, scalar_prefetch = 0 : i64, scratch_operands = 1 : i64, tpu.core_type = #tpu.core_type<tc>, window_params = [{transform_indices = @transform_0, window_bounds = array<i64: 128, 32>}, {transform_indices = @transform_1, window_bounds = array<i64: 128, 32>}, {pipeline_mode = #tpu.pipeline_mode<synchronous>, transform_indices = @transform_2, window_bounds = array<i64: 32, 32>}, {pipeline_mode = #tpu.pipeline_mode<synchronous>, transform_indices = @transform_3, window_bounds = array<i64: 1, 32>}, {transform_indices = @transform_4, window_bounds = array<i64: 1, 8, 128>}, {transform_indices = @transform_5, window_bounds = array<i64: 1, 8, 128>}]} {
    %c0_i32 = arith.constant 0 : i32
    %0 = arith.cmpi eq, %arg1, %c0_i32 : i32
    %1 = arith.extui %0 : i1 to i32
    %c0_i32_0 = arith.constant 0 : i32
    %2 = arith.cmpi ne, %1, %c0_i32_0 : i32
    scf.if %2 {
      %cst_25 = arith.constant 0.000000e+00 : f32
      %c0_26 = arith.constant 0 : index
      %65 = memref.load %arg8[%c0_26] : memref<2xf32, #tpu.memory_space<smem>>
      memref.store %cst_25, %arg8[%c0_26] : memref<2xf32, #tpu.memory_space<smem>>
      %cst_27 = arith.constant 0.000000e+00 : f32
      %c1_28 = arith.constant 1 : index
      %66 = memref.load %arg8[%c1_28] : memref<2xf32, #tpu.memory_space<smem>>
      memref.store %cst_27, %arg8[%c1_28] : memref<2xf32, #tpu.memory_space<smem>>
    } else {
    }
    %c0 = arith.constant 0 : index
    %c0_1 = arith.constant 0 : index
    %3 = vector.load %arg2[%c0, %c0_1] : memref<128x32xf32, #tpu.memory_space<vmem>>, vector<128x32xf32>
    %c0_2 = arith.constant 0 : index
    %c0_3 = arith.constant 0 : index
    %4 = vector.load %arg4[%c0_2, %c0_3] : memref<32x32xf32, #tpu.memory_space<vmem>>, vector<32x32xf32>
    %cst = arith.constant dense<0.000000e+00> : vector<128x32xf32>
    %5 = tpu.matmul %3, %4, %cst {dimension_numbers = #tpu.dot_dimension_numbers<[1], [0], [0], [1], [0, 0, 1, 1], [], []>} : vector<128x32xf32>, vector<32x32xf32>, vector<128x32xf32> -> vector<128x32xf32>
    %c0_4 = arith.constant 0 : index
    %c0_5 = arith.constant 0 : index
    %6 = vector.load %arg5[%c0_4, %c0_5] : memref<1x32xf32, #tpu.memory_space<vmem>>, vector<1x32xf32>
    %7 = vector.broadcast %6 : vector<1x32xf32> to vector<128x32xf32>
    %8 = arith.addf %5, %7 : vector<128x32xf32>
    %cst_6 = arith.constant dense<0xFF800000> : vector<128xf32>
    %9 = vector.multi_reduction <maximumf>, %8, %cst_6 [1] : vector<128x32xf32> to vector<128xf32>
    %10 = vector.shape_cast %9 : vector<128xf32> to vector<128x1xf32>
    %11 = vector.broadcast %10 : vector<128x1xf32> to vector<128x32xf32>
    %12 = arith.subf %8, %11 : vector<128x32xf32>
    %13 = math.exp %12 : vector<128x32xf32>
    %cst_7 = arith.constant dense<0.000000e+00> : vector<128xf32>
    %14 = vector.multi_reduction <add>, %13, %cst_7 [1] : vector<128x32xf32> to vector<128xf32>
    %15 = vector.shape_cast %14 : vector<128xf32> to vector<128x1xf32>
    %16 = tpu.reciprocal %15 {approx = true} : vector<128x1xf32> -> vector<128x1xf32>
    %17 = vector.broadcast %16 : vector<128x1xf32> to vector<128x32xf32>
    %18 = arith.mulf %13, %17 : vector<128x32xf32>
    %19 = math.exp %18 : vector<128x32xf32>
    %cst_8 = arith.constant dense<0.000000e+00> : vector<128xf32>
    %20 = vector.multi_reduction <add>, %19, %cst_8 [1] : vector<128x32xf32> to vector<128xf32>
    %21 = vector.shape_cast %20 : vector<128xf32> to vector<128x1xf32>
    %22 = math.log %21 : vector<128x1xf32>
    %c0_9 = arith.constant 0 : index
    %c0_10 = arith.constant 0 : index
    %23 = vector.load %arg3[%c0_9, %c0_10] : memref<128x32xf32, #tpu.memory_space<vmem>>, vector<128x32xf32>
    %24 = arith.mulf %23, %18 : vector<128x32xf32>
    %cst_11 = arith.constant dense<0.000000e+00> : vector<128xf32>
    %25 = vector.multi_reduction <add>, %24, %cst_11 [1] : vector<128x32xf32> to vector<128xf32>
    %26 = vector.shape_cast %25 : vector<128xf32> to vector<128x1xf32>
    %cst_12 = arith.constant dense<0.000000e+00> : vector<128xf32>
    %27 = vector.multi_reduction <add>, %23, %cst_12 [1] : vector<128x32xf32> to vector<128xf32>
    %28 = vector.shape_cast %27 : vector<128xf32> to vector<128x1xf32>
    %29 = arith.mulf %28, %22 : vector<128x1xf32>
    %30 = arith.subf %29, %26 : vector<128x1xf32>
    %c1_i32 = arith.constant 1 : i32
    %31 = arith.muli %arg0, %c1_i32 : i32
    %32 = arith.addi %31, %arg1 : i32
    %c128_i32 = arith.constant 128 : i32
    %33 = arith.muli %32, %c128_i32 : i32
    %34 = tpu.iota {dimensions = array<i32: 0>} : vector<128x1xi32>
    %35 = vector.broadcast %33 : i32 to vector<128x1xi32>
    %36 = arith.addi %35, %34 : vector<128x1xi32>
    %c128_i32_13 = arith.constant 128 : i32
    %37 = vector.broadcast %c128_i32_13 : i32 to vector<128x1xi32>
    %38 = arith.cmpi slt, %36, %37 : vector<128x1xi32>
    %39 = vector.extract_strided_slice %23 {offsets = [0, 31], sizes = [128, 1], strides = [1, 1]} : vector<128x32xf32> to vector<128x1xf32>
    %cst_14 = arith.constant 1.000000e+00 : f32
    %40 = vector.broadcast %cst_14 : f32 to vector<128x1xf32>
    %41 = arith.cmpf oeq, %39, %40 : vector<128x1xf32>
    %42 = arith.andi %41, %38 : vector<128x1xi1>
    %cst_15 = arith.constant 0.000000e+00 : f32
    %43 = vector.broadcast %cst_15 : f32 to vector<128x1xf32>
    %44 = arith.select %42, %30, %43 : vector<128x1xi1>, vector<128x1xf32>
    %45 = vector.shape_cast %44 : vector<128x1xf32> to vector<1x128x1xf32>
    %cst_16 = arith.constant dense<0.000000e+00> : vector<1xf32>
    %46 = vector.multi_reduction <add>, %45, %cst_16 [1, 2] : vector<1x128x1xf32> to vector<1xf32>
    %47 = vector.shape_cast %46 : vector<1xf32> to vector<1x1x1xf32>
    %48 = vector.extract %47[0, 0, 0] : f32 from vector<1x1x1xf32>
    %cst_17 = arith.constant 1.000000e+00 : f32
    %cst_18 = arith.constant 0.000000e+00 : f32
    %49 = vector.broadcast %cst_17 : f32 to vector<128x1xf32>
    %50 = vector.broadcast %cst_18 : f32 to vector<128x1xf32>
    %51 = arith.select %42, %49, %50 : vector<128x1xi1>, vector<128x1xf32>
    %52 = vector.shape_cast %51 : vector<128x1xf32> to vector<1x128x1xf32>
    %cst_19 = arith.constant dense<0.000000e+00> : vector<1xf32>
    %53 = vector.multi_reduction <add>, %52, %cst_19 [1, 2] : vector<1x128x1xf32> to vector<1xf32>
    %54 = vector.shape_cast %53 : vector<1xf32> to vector<1x1x1xf32>
    %55 = vector.extract %54[0, 0, 0] : f32 from vector<1x1x1xf32>
    %c0_20 = arith.constant 0 : index
    %56 = memref.load %arg8[%c0_20] : memref<2xf32, #tpu.memory_space<smem>>
    %57 = arith.addf %56, %48 : f32
    %c0_21 = arith.constant 0 : index
    %58 = memref.load %arg8[%c0_21] : memref<2xf32, #tpu.memory_space<smem>>
    memref.store %57, %arg8[%c0_21] : memref<2xf32, #tpu.memory_space<smem>>
    %c1 = arith.constant 1 : index
    %59 = memref.load %arg8[%c1] : memref<2xf32, #tpu.memory_space<smem>>
    %60 = arith.addf %59, %55 : f32
    %c1_22 = arith.constant 1 : index
    %61 = memref.load %arg8[%c1_22] : memref<2xf32, #tpu.memory_space<smem>>
    memref.store %60, %arg8[%c1_22] : memref<2xf32, #tpu.memory_space<smem>>
    %c0_i32_23 = arith.constant 0 : i32
    %62 = arith.cmpi eq, %arg1, %c0_i32_23 : i32
    %63 = arith.extui %62 : i1 to i32
    %c0_i32_24 = arith.constant 0 : i32
    %64 = arith.cmpi ne, %63, %c0_i32_24 : i32
    scf.if %64 {
      %c0_25 = arith.constant 0 : index
      %65 = memref.load %arg8[%c0_25] : memref<2xf32, #tpu.memory_space<smem>>
      %66 = vector.broadcast %65 : f32 to vector<1x8x128xf32>
      %c0_26 = arith.constant 0 : index
      %c0_27 = arith.constant 0 : index
      %c0_28 = arith.constant 0 : index
      %67 = vector.load %arg6[%c0_26, %c0_27, %c0_28] : memref<1x8x128xf32, #tpu.memory_space<vmem>>, vector<1x8x128xf32>
      tpu.vector_store %arg6[%c0_26, %c0_27, %c0_28], %66 {strides = array<i32>} : memref<1x8x128xf32, #tpu.memory_space<vmem>>, vector<1x8x128xf32>,
      %c1_29 = arith.constant 1 : index
      %68 = memref.load %arg8[%c1_29] : memref<2xf32, #tpu.memory_space<smem>>
      %69 = vector.broadcast %68 : f32 to vector<1x8x128xf32>
      %c0_30 = arith.constant 0 : index
      %c0_31 = arith.constant 0 : index
      %c0_32 = arith.constant 0 : index
      %70 = vector.load %arg7[%c0_30, %c0_31, %c0_32] : memref<1x8x128xf32, #tpu.memory_space<vmem>>, vector<1x8x128xf32>
      tpu.vector_store %arg7[%c0_30, %c0_31, %c0_32], %69 {strides = array<i32>} : memref<1x8x128xf32, #tpu.memory_space<vmem>>, vector<1x8x128xf32>,
    } else {
    }
    return
  }
  func.func @transform_0(%arg0: i32, %arg1: i32) -> (i32, i32) {
    %c1_i32 = arith.constant 1 : i32
    %0 = arith.muli %arg0, %c1_i32 : i32
    %1 = arith.addi %0, %arg1 : i32
    %c0_i32 = arith.constant 0 : i32
    %2 = arith.minsi %1, %c0_i32 : i32
    %c0_i32_0 = arith.constant 0 : i32
    %c0_i32_1 = arith.constant 0 : i32
    return %2, %c0_i32_0 : i32, i32
  }
  func.func @transform_1(%arg0: i32, %arg1: i32) -> (i32, i32) {
    %c1_i32 = arith.constant 1 : i32
    %0 = arith.muli %arg0, %c1_i32 : i32
    %1 = arith.addi %0, %arg1 : i32
    %c0_i32 = arith.constant 0 : i32
    %2 = arith.minsi %1, %c0_i32 : i32
    %c0_i32_0 = arith.constant 0 : i32
    %c0_i32_1 = arith.constant 0 : i32
    return %2, %c0_i32_0 : i32, i32
  }
  func.func @transform_2(%arg0: i32, %arg1: i32) -> (i32, i32) {
    %c0_i32 = arith.constant 0 : i32
    %c0_i32_0 = arith.constant 0 : i32
    %c0_i32_1 = arith.constant 0 : i32
    return %c0_i32, %c0_i32_0 : i32, i32
  }
  func.func @transform_3(%arg0: i32, %arg1: i32) -> (i32, i32) {
    %c0_i32 = arith.constant 0 : i32
    %c0_i32_0 = arith.constant 0 : i32
    %c0_i32_1 = arith.constant 0 : i32
    return %c0_i32, %c0_i32_0 : i32, i32
  }
  func.func @transform_4(%arg0: i32, %arg1: i32) -> (i32, i32, i32) {
    %c0_i32 = arith.constant 0 : i32
    %c0_i32_0 = arith.constant 0 : i32
    %c0_i32_1 = arith.constant 0 : i32
    return %arg0, %c0_i32, %c0_i32_0 : i32, i32, i32
  }
  func.func @transform_5(%arg0: i32, %arg1: i32) -> (i32, i32, i32) {
    %c0_i32 = arith.constant 0 : i32
    %c0_i32_0 = arith.constant 0 : i32
    %c0_i32_1 = arith.constant 0 : i32
    return %arg0, %c0_i32, %c0_i32_0 : i32, i32, i32
  }
}

</mosaic_0001>

<llo_original>
// kernel: tpu_custom_call.1
$region0: #{tpu_custom_call.1}
  #allocation0 [shape = 'u32[]', space=smem, size = 0x4, offset = 0x4, fixed_abs, tag = 'smem constant byte address 0x4 - core index']
  #allocation1 [shape = 'u32[72,128]{1,0:T(1,128)}', space=vmem, size = 0x9000, scoped, tag = 'internal scratch']
  #allocation2 [shape = 'f32[2]{0:T(128)}', space=smem, size = 0x200, scoped, tag = 'scratch operand']
  %s0 = inlined_call_operand.vmem [shape: f32[128,32], index: 0, kind: input, shape index: {}]
  %s1 = inlined_call_operand.vmem [shape: f32[128,32], index: 1, kind: input, shape index: {}]
  %s2 = inlined_call_operand.vmem [shape: f32[32,32], index: 2, kind: input, shape index: {}]
  %s3 = inlined_call_operand.vmem [shape: f32[1,32], index: 3, kind: input, shape index: {}]
  %s4 = inlined_call_operand.hbm [shape: f32[1,8,128], index: 4, kind: output, shape index: {0}]
  %s5 = inlined_call_operand.hbm [shape: f32[1,8,128], index: 5, kind: output, shape index: {1}]
  %6 = xla_tuple %s4, %s5
  %s7 = sld [smem:[#allocation0]]
  $region42: #{tpu_custom_call.1} parent=0
    _
  %s9 = ssub.s32 1, %s7
  %s10 = scalar_select 0, %s9, %s7
  $region1: #{tpu_custom_call.1} parent=0
    #allocation3 [shape = 'u8[4096]{0}', space=vmem, size = 0x1000, scoped, tag = 'output window, operand 0, single buffered']
    #allocation4 [shape = 's32[1]{0}', space=sflag, size = 0x4, scoped, tag = 'scoped memory for tpu_custom_call.1']
    #allocation5 [shape = 'u8[4096]{0}', space=vmem, size = 0x1000, scoped, tag = 'output window, operand 1, single buffered']
    #allocation6 [shape = 's32[1]{0}', space=sflag, size = 0x4, scoped, tag = 'scoped memory for tpu_custom_call.1']
    %11 = vsyncpa [#allocation4], 0
    %12 = vsyncpa [#allocation6], 0
    // Predicated region
    $region2: #{tpu_custom_call.1} parent=1 // pred_check
      _
    $region3: #{tpu_custom_call.1} parent=1 // pred_check_branch
      %14 = sbr.rel (0) target = $region5
    $region4: #{tpu_custom_call.1} parent=1 // pred_region
      %s15 = sadd.s32 0, 0
      %p16 = scmp.lt.s32.totalorder %s15, 0
      %s17 = scalar_select %p16, %s15, 0
      %s18 = smul.u32 16, %s17
      %p19 = scmp.lt.s32.totalorder %s18, 15
      %s20 = scalar_select %p19, %s18, 15
      %s21 = smul.addr %s20, 8
      %s22 = scalar_lea.vmem %s0, %s21
      %s23 = sadd.s32 0, 0
      %p24 = scmp.lt.s32.totalorder %s23, 0
      %s25 = scalar_select %p24, %s23, 0
      %s26 = smul.u32 16, %s25
    $region5: #{tpu_custom_call.1} parent=1 // pred_fallthru
      _
    // Predicated region
    $region6: #{tpu_custom_call.1} parent=1 // pred_check
      _
    $region7: #{tpu_custom_call.1} parent=1 // pred_check_branch
      %28 = sbr.rel (0) target = $region9
    $region8: #{tpu_custom_call.1} parent=1 // pred_region
      %s29 = sadd.s32 0, 0
      %p30 = scmp.lt.s32.totalorder %s29, 0
      %s31 = scalar_select %p30, %s29, 0
      %s32 = smul.u32 16, %s31
      %p33 = scmp.lt.s32.totalorder %s32, 15
      %s34 = scalar_select %p33, %s32, 15
      %s35 = smul.addr %s34, 8
      %s36 = scalar_lea.vmem %s1, %s35
      %s37 = sadd.s32 0, 0
      %p38 = scmp.lt.s32.totalorder %s37, 0
      %s39 = scalar_select %p38, %s37, 0
      %s40 = smul.u32 16, %s39
    $region9: #{tpu_custom_call.1} parent=1 // pred_fallthru
      _
    // Predicated region
    $region10: #{tpu_custom_call.1} parent=1 // pred_check
      _
    $region11: #{tpu_custom_call.1} parent=1 // pred_check_branch
      %42 = sbr.rel (0) target = $region13
    $region12: #{tpu_custom_call.1} parent=1 // pred_region
      _
    $region13: #{tpu_custom_call.1} parent=1 // pred_fallthru
      _
    // Predicated region
    $region14: #{tpu_custom_call.1} parent=1 // pred_check
      _
    $region15: #{tpu_custom_call.1} parent=1 // pred_check_branch
      %44 = sbr.rel (0) target = $region17
    $region16: #{tpu_custom_call.1} parent=1 // pred_region
      _
    $region17: #{tpu_custom_call.1} parent=1 // pred_fallthru
      _
    %s45 = sadd.s32 0, 0
    %p46 = scmp.lt.s32.totalorder %s45, 0
    %s47 = scalar_select %p46, %s45, 0
    %s48 = smul.u32 16, %s47
    %p49 = scmp.lt.s32.totalorder %s48, 15
    %s50 = scalar_select %p49, %s48, 15
    %s51 = smul.addr %s50, 8
    %s52 = scalar_lea.vmem %s0, %s51
    %s53 = sadd.s32 0, 0
    %p54 = scmp.lt.s32.totalorder %s53, 0
    %s55 = scalar_select %p54, %s53, 0
    %s56 = smul.u32 16, %s55
    %p57 = scmp.lt.s32.totalorder %s56, 15
    %s58 = scalar_select %p57, %s56, 15
    %s59 = smul.addr %s58, 8
    %s60 = scalar_lea.vmem %s1, %s59
    %s61 = sadd.s32 0, 0
    %p62 = scmp.lt.s32.totalorder %s61, 0
    %s63 = scalar_select %p62, %s61, 0
    %s64 = smul.u32 16, %s63
    %p65 = scmp.lt.s32.totalorder %s64, 15
    %s66 = scalar_select %p65, %s64, 15
    %s67 = smul.addr %s66, 8
    %s68 = scalar_lea.vmem %s0, %s67
    %s69 = sadd.s32 0, 0
    %p70 = scmp.lt.s32.totalorder %s69, 0
    %s71 = scalar_select %p70, %s69, 0
    %s72 = smul.u32 16, %s71
    %s73 = sadd.s32 0, 0
    %p74 = scmp.lt.s32.totalorder %s73, 0
    %s75 = scalar_select %p74, %s73, 0
    %s76 = smul.u32 16, %s75
    %p77 = scmp.lt.s32.totalorder %s76, 15
    %s78 = scalar_select %p77, %s76, 15
    %s79 = smul.addr %s78, 8
    %s80 = scalar_lea.vmem %s1, %s79
    %s81 = sadd.s32 0, 0
    %p82 = scmp.lt.s32.totalorder %s81, 0
    %s83 = scalar_select %p82, %s81, 0
    %s84 = smul.u32 16, %s83
    %p85 = scmp.eq.s32.totalorder 0, 0
    // Predicated region
    $region18: #{tpu_custom_call.1} parent=1 // pred_check
      %p86 = pneg %p85
    $region19: #{tpu_custom_call.1} parent=1 // pred_check_branch
      %88 = sbr.rel (%p86) target = $region21
    $region20: #{tpu_custom_call.1} parent=1 // pred_region
      %s89 = scalar_lea.smem [#allocation2], 0
      %90 = sst [smem:[%s89]] 0.0
      %s91 = scalar_lea.smem [#allocation2], 1
      %92 = sst [smem:[%s91]] 0.0
    $region21: #{tpu_custom_call.1} parent=1 // pred_fallthru
      _
    %v93 = vld [vmem:[%s68] sm:$0xff]
    %v94 = vld [vmem:[%s68 + $0x8] sm:$0xff]
    %v95 = vld [vmem:[%s68 + $0x10] sm:$0xff]
    %v96 = vld [vmem:[%s68 + $0x18] sm:$0xff]
    %v97 = vld [vmem:[%s68 + $0x20] sm:$0xff]
    %v98 = vld [vmem:[%s68 + $0x28] sm:$0xff]
    %v99 = vld [vmem:[%s68 + $0x30] sm:$0xff]
    %v100 = vld [vmem:[%s68 + $0x38] sm:$0xff]
    %v101 = vld [vmem:[%s68 + $0x40] sm:$0xff]
    %v102 = vld [vmem:[%s68 + $0x48] sm:$0xff]
    %v103 = vld [vmem:[%s68 + $0x50] sm:$0xff]
    %v104 = vld [vmem:[%s68 + $0x58] sm:$0xff]
    %v105 = vld [vmem:[%s68 + $0x60] sm:$0xff]
    %v106 = vld [vmem:[%s68 + $0x68] sm:$0xff]
    %v107 = vld [vmem:[%s68 + $0x70] sm:$0xff]
    %v108 = vld [vmem:[%s68 + $0x78] sm:$0xff]
    %v109 = vld [vmem:[%s2] sm:$0xff]
    %v110 = vld [vmem:[%s2 + $0x8] sm:$0xff]
    %v111 = vld [vmem:[%s2 + $0x10] sm:$0xff]
    %v112 = vld [vmem:[%s2 + $0x18] sm:$0xff]
    %v113 = vld [vmem:[%s3] sm:$0x1]
    %v115 = vperm.slane %v113, 0
    %vm117 = vcmask 261120
    %v119 = vsel %vm117, %v93, 0
    %v122 = vsel %vm117, %v94, 0
    %v125 = vsel %vm117, %v95, 0
    %v128 = vsel %vm117, %v96, 0
    %v131 = vsel %vm117, %v97, 0
    %v134 = vsel %vm117, %v98, 0
    %v137 = vsel %vm117, %v99, 0
    %v140 = vsel %vm117, %v100, 0
    %v143 = vsel %vm117, %v101, 0
    %v146 = vsel %vm117, %v102, 0
    %v149 = vsel %vm117, %v103, 0
    %v152 = vsel %vm117, %v104, 0
    %v155 = vsel %vm117, %v105, 0
    %v158 = vsel %vm117, %v106, 0
    %v161 = vsel %vm117, %v107, 0
    %v164 = vsel %vm117, %v108, 0
    %166 = vmatpush.msra.mxu0 0.0
    %167 = vmatpush.msra.mxu0 0.0
    %168 = vmatpush.msra.mxu0 0.0
    %169 = vmatpush.msra.mxu0 0.0
    %170 = vmatpush.msra.mxu0 0.0
    %171 = vmatpush.msra.mxu0 0.0
    %172 = vmatpush.msra.mxu0 0.0
    %173 = vmatpush.msra.mxu0 0.0
    %174 = vmatpush.msra.mxu0 0.0
    %175 = vmatpush.msra.mxu0 0.0
    %176 = vmatpush.msra.mxu0 0.0
    %177 = vmatpush.msra.mxu0 0.0
    %178 = vmatpush.msra.mxu0 %v112
    %179 = vmatpush.msra.mxu0 %v111
    %180 = vmatpush.msra.mxu0 %v110
    %181 = vmatpush.msra.mxu0 %v109
    %182 = vmatmul.f32.gmra.mxu0 %v119
    %v183 = vpop.f32.mrf.mxu0
    %v184 = vadd.f32 %v115, %v183
    %185 = vmatmul.f32.gmra.mxu0 %v122
    %v186 = vpop.f32.mrf.mxu0
    %v187 = vadd.f32 %v115, %v186
    %188 = vmatmul.f32.gmra.mxu0 %v125
    %v189 = vpop.f32.mrf.mxu0
    %v190 = vadd.f32 %v115, %v189
    %191 = vmatmul.f32.gmra.mxu0 %v128
    %v192 = vpop.f32.mrf.mxu0
    %v193 = vadd.f32 %v115, %v192
    %194 = vmatmul.f32.gmra.mxu0 %v131
    %v195 = vpop.f32.mrf.mxu0
    %v196 = vadd.f32 %v115, %v195
    %197 = vmatmul.f32.gmra.mxu0 %v134
    %v198 = vpop.f32.mrf.mxu0
    %v199 = vadd.f32 %v115, %v198
    %200 = vmatmul.f32.gmra.mxu0 %v137
    %v201 = vpop.f32.mrf.mxu0
    %v202 = vadd.f32 %v115, %v201
    %203 = vmatmul.f32.gmra.mxu0 %v140
    %v204 = vpop.f32.mrf.mxu0
    %v205 = vadd.f32 %v115, %v204
    %206 = vmatmul.f32.gmra.mxu0 %v143
    %v207 = vpop.f32.mrf.mxu0
    %v208 = vadd.f32 %v115, %v207
    %209 = vmatmul.f32.gmra.mxu0 %v146
    %v210 = vpop.f32.mrf.mxu0
    %v211 = vadd.f32 %v115, %v210
    %212 = vmatmul.f32.gmra.mxu0 %v149
    %v213 = vpop.f32.mrf.mxu0
    %v214 = vadd.f32 %v115, %v213
    %215 = vmatmul.f32.gmra.mxu0 %v152
    %v216 = vpop.f32.mrf.mxu0
    %v217 = vadd.f32 %v115, %v216
    %218 = vmatmul.f32.gmra.mxu0 %v155
    %v219 = vpop.f32.mrf.mxu0
    %v220 = vadd.f32 %v115, %v219
    %221 = vmatmul.f32.gmra.mxu0 %v158
    %v222 = vpop.f32.mrf.mxu0
    %v223 = vadd.f32 %v115, %v222
    %224 = vmatmul.f32.gmra.mxu0 %v161
    %v225 = vpop.f32.mrf.mxu0
    %v226 = vadd.f32 %v115, %v225
    %227 = vmatmul.f32.gmra.mxu0 %v164
    %v228 = vpop.f32.mrf.mxu0
    %v229 = vadd.f32 %v115, %v228
    %230 = vdwg.mxu0
    %v231 = vsel %vm117, %v184, -inf
    %232 = vmax.xlane.f32.xlu0 %v231
    %v233 = vpop.xlane.xlu0 %232
    %v234 = vsel %vm117, %v187, -inf
    %235 = vmax.xlane.f32.xlu0 %v234
    %v236 = vpop.xlane.xlu0 %235
    %v237 = vsel %vm117, %v190, -inf
    %238 = vmax.xlane.f32.xlu0 %v237
    %v239 = vpop.xlane.xlu0 %238
    %v240 = vsel %vm117, %v193, -inf
    %241 = vmax.xlane.f32.xlu0 %v240
    %v242 = vpop.xlane.xlu0 %241
    %v243 = vsel %vm117, %v196, -inf
    %244 = vmax.xlane.f32.xlu0 %v243
    %v245 = vpop.xlane.xlu0 %244
    %v246 = vsel %vm117, %v199, -inf
    %247 = vmax.xlane.f32.xlu0 %v246
    %v248 = vpop.xlane.xlu0 %247
    %v249 = vsel %vm117, %v202, -inf
    %250 = vmax.xlane.f32.xlu0 %v249
    %v251 = vpop.xlane.xlu0 %250
    %v252 = vsel %vm117, %v205, -inf
    %253 = vmax.xlane.f32.xlu0 %v252
    %v254 = vpop.xlane.xlu0 %253
    %v255 = vsel %vm117, %v208, -inf
    %256 = vmax.xlane.f32.xlu0 %v255
    %v257 = vpop.xlane.xlu0 %256
    %v258 = vsel %vm117, %v211, -inf
    %259 = vmax.xlane.f32.xlu0 %v258
    %v260 = vpop.xlane.xlu0 %259
    %v261 = vsel %vm117, %v214, -inf
    %262 = vmax.xlane.f32.xlu0 %v261
    %v263 = vpop.xlane.xlu0 %262
    %v264 = vsel %vm117, %v217, -inf
    %265 = vmax.xlane.f32.xlu0 %v264
    %v266 = vpop.xlane.xlu0 %265
    %v267 = vsel %vm117, %v220, -inf
    %268 = vmax.xlane.f32.xlu0 %v267
    %v269 = vpop.xlane.xlu0 %268
    %v270 = vsel %vm117, %v223, -inf
    %271 = vmax.xlane.f32.xlu0 %v270
    %v272 = vpop.xlane.xlu0 %271
    %v273 = vsel %vm117, %v226, -inf
    %274 = vmax.xlane.f32.xlu0 %v273
    %v275 = vpop.xlane.xlu0 %274
    %v276 = vsel %vm117, %v229, -inf
    %277 = vmax.xlane.f32.xlu0 %v276
    %v278 = vpop.xlane.xlu0 %277
    %v279 = vsub.f32 %v184, %v233
    %v280 = vsub.f32 %v187, %v236
    %v281 = vsub.f32 %v190, %v239
    %v282 = vsub.f32 %v193, %v242
    %v283 = vsub.f32 %v196, %v245
    %v284 = vsub.f32 %v199, %v248
    %v285 = vsub.f32 %v202, %v251
    %v286 = vsub.f32 %v205, %v254
    %v287 = vsub.f32 %v208, %v257
    %v288 = vsub.f32 %v211, %v260
    %v289 = vsub.f32 %v214, %v263
    %v290 = vsub.f32 %v217, %v266
    %v291 = vsub.f32 %v220, %v269
    %v292 = vsub.f32 %v223, %v272
    %v293 = vsub.f32 %v226, %v275
    %v294 = vsub.f32 %v229, %v278
    %v295 = vmul.f32 %v279, 1.442695
    %v296 = vpow.pop %v295
    %v297 = vmul.f32 %v280, 1.442695
    %v298 = vpow.pop %v297
    %v299 = vmul.f32 %v281, 1.442695
    %v300 = vpow.pop %v299
    %v301 = vmul.f32 %v282, 1.442695
    %v302 = vpow.pop %v301
    %v303 = vmul.f32 %v283, 1.442695
    %v304 = vpow.pop %v303
    %v305 = vmul.f32 %v284, 1.442695
    %v306 = vpow.pop %v305
    %v307 = vmul.f32 %v285, 1.442695
    %v308 = vpow.pop %v307
    %v309 = vmul.f32 %v286, 1.442695
    %v310 = vpow.pop %v309
    %v311 = vmul.f32 %v287, 1.442695
    %v312 = vpow.pop %v311
    %v313 = vmul.f32 %v288, 1.442695
    %v314 = vpow.pop %v313
    %v315 = vmul.f32 %v289, 1.442695
    %v316 = vpow.pop %v315
    %v317 = vmul.f32 %v290, 1.442695
    %v318 = vpow.pop %v317
    %v319 = vmul.f32 %v291, 1.442695
    %v320 = vpow.pop %v319
    %v321 = vmul.f32 %v292, 1.442695
    %v322 = vpow.pop %v321
    %v323 = vmul.f32 %v293, 1.442695
    %v324 = vpow.pop %v323
    %v325 = vmul.f32 %v294, 1.442695
    %v326 = vpow.pop %v325
    %v327 = vsel %vm117, %v296, 0.0
    %328 = vadd.xlane.f32.xlu0 %v327
    %v329 = vpop.xlane.xlu0 %328
    %v330 = vsel %vm117, %v298, 0.0
    %331 = vadd.xlane.f32.xlu0 %v330
    %v332 = vpop.xlane.xlu0 %331
    %v333 = vsel %vm117, %v300, 0.0
    %334 = vadd.xlane.f32.xlu0 %v333
    %v335 = vpop.xlane.xlu0 %334
    %v336 = vsel %vm117, %v302, 0.0
    %337 = vadd.xlane.f32.xlu0 %v336
    %v338 = vpop.xlane.xlu0 %337
    %v339 = vsel %vm117, %v304, 0.0
    %340 = vadd.xlane.f32.xlu0 %v339
    %v341 = vpop.xlane.xlu0 %340
    %v342 = vsel %vm117, %v306, 0.0
    %343 = vadd.xlane.f32.xlu0 %v342
    %v344 = vpop.xlane.xlu0 %343
    %v345 = vsel %vm117, %v308, 0.0
    %346 = vadd.xlane.f32.xlu0 %v345
    %v347 = vpop.xlane.xlu0 %346
    %v348 = vsel %vm117, %v310, 0.0
    %349 = vadd.xlane.f32.xlu0 %v348
    %v350 = vpop.xlane.xlu0 %349
    %v351 = vsel %vm117, %v312, 0.0
    %352 = vadd.xlane.f32.xlu0 %v351
    %v353 = vpop.xlane.xlu0 %352
    %v354 = vsel %vm117, %v314, 0.0
    %355 = vadd.xlane.f32.xlu0 %v354
    %v356 = vpop.xlane.xlu0 %355
    %v357 = vsel %vm117, %v316, 0.0
    %358 = vadd.xlane.f32.xlu0 %v357
    %v359 = vpop.xlane.xlu0 %358
    %v360 = vsel %vm117, %v318, 0.0
    %361 = vadd.xlane.f32.xlu0 %v360
    %v362 = vpop.xlane.xlu0 %361
    %v363 = vsel %vm117, %v320, 0.0
    %364 = vadd.xlane.f32.xlu0 %v363
    %v365 = vpop.xlane.xlu0 %364
    %v366 = vsel %vm117, %v322, 0.0
    %367 = vadd.xlane.f32.xlu0 %v366
    %v368 = vpop.xlane.xlu0 %367
    %v369 = vsel %vm117, %v324, 0.0
    %370 = vadd.xlane.f32.xlu0 %v369
    %v371 = vpop.xlane.xlu0 %370
    %v372 = vsel %vm117, %v326, 0.0
    %373 = vadd.xlane.f32.xlu0 %v372
    %v374 = vpop.xlane.xlu0 %373
    %v375 = vrcp.pop %v329
    %v376 = vrcp.pop %v332
    %v377 = vrcp.pop %v335
    %v378 = vrcp.pop %v338
    %v379 = vrcp.pop %v341
    %v380 = vrcp.pop %v344
    %v381 = vrcp.pop %v347
    %v382 = vrcp.pop %v350
    %v383 = vrcp.pop %v353
    %v384 = vrcp.pop %v356
    %v385 = vrcp.pop %v359
    %v386 = vrcp.pop %v362
    %v387 = vrcp.pop %v365
    %v388 = vrcp.pop %v368
    %v389 = vrcp.pop %v371
    %v390 = vrcp.pop %v374
    %v391 = vmul.f32 %v296, %v375
    %v392 = vmul.f32 %v298, %v376
    %v393 = vmul.f32 %v300, %v377
    %v394 = vmul.f32 %v302, %v378
    %v395 = vmul.f32 %v304, %v379
    %v396 = vmul.f32 %v306, %v380
    %v397 = vmul.f32 %v308, %v381
    %v398 = vmul.f32 %v310, %v382
    %v399 = vmul.f32 %v312, %v383
    %v400 = vmul.f32 %v314, %v384
    %v401 = vmul.f32 %v316, %v385
    %v402 = vmul.f32 %v318, %v386
    %v403 = vmul.f32 %v320, %v387
    %v404 = vmul.f32 %v322, %v388
    %v405 = vmul.f32 %v324, %v389
    %v406 = vmul.f32 %v326, %v390
    %v407 = vmul.f32 %v391, 1.442695
    %v408 = vpow.pop %v407
    %v409 = vmul.f32 %v392, 1.442695
    %v410 = vpow.pop %v409
    %v411 = vmul.f32 %v393, 1.442695
    %v412 = vpow.pop %v411
    %v413 = vmul.f32 %v394, 1.442695
    %v414 = vpow.pop %v413
    %v415 = vmul.f32 %v395, 1.442695
    %v416 = vpow.pop %v415
    %v417 = vmul.f32 %v396, 1.442695
    %v418 = vpow.pop %v417
    %v419 = vmul.f32 %v397, 1.442695
    %v420 = vpow.pop %v419
    %v421 = vmul.f32 %v398, 1.442695
    %v422 = vpow.pop %v421
    %v423 = vmul.f32 %v399, 1.442695
    %v424 = vpow.pop %v423
    %v425 = vmul.f32 %v400, 1.442695
    %v426 = vpow.pop %v425
    %v427 = vmul.f32 %v401, 1.442695
    %v428 = vpow.pop %v427
    %v429 = vmul.f32 %v402, 1.442695
    %v430 = vpow.pop %v429
    %v431 = vmul.f32 %v403, 1.442695
    %v432 = vpow.pop %v431
    %v433 = vmul.f32 %v404, 1.442695
    %v434 = vpow.pop %v433
    %v435 = vmul.f32 %v405, 1.442695
    %v436 = vpow.pop %v435
    %v437 = vmul.f32 %v406, 1.442695
    %v438 = vpow.pop %v437
    %v439 = vsel %vm117, %v408, 0.0
    %440 = vadd.xlane.f32.xlu0 %v439
    %v441 = vpop.xlane.xlu0 %440
    %v442 = vsel %vm117, %v410, 0.0
    %443 = vadd.xlane.f32.xlu0 %v442
    %v444 = vpop.xlane.xlu0 %443
    %v445 = vsel %vm117, %v412, 0.0
    %446 = vadd.xlane.f32.xlu0 %v445
    %v447 = vpop.xlane.xlu0 %446
    %v448 = vsel %vm117, %v414, 0.0
    %449 = vadd.xlane.f32.xlu0 %v448
    %v450 = vpop.xlane.xlu0 %449
    %v451 = vsel %vm117, %v416, 0.0
    %452 = vadd.xlane.f32.xlu0 %v451
    %v453 = vpop.xlane.xlu0 %452
    %v454 = vsel %vm117, %v418, 0.0
    %455 = vadd.xlane.f32.xlu0 %v454
    %v456 = vpop.xlane.xlu0 %455
    %v457 = vsel %vm117, %v420, 0.0
    %458 = vadd.xlane.f32.xlu0 %v457
    %v459 = vpop.xlane.xlu0 %458
    %v460 = vsel %vm117, %v422, 0.0
    %461 = vadd.xlane.f32.xlu0 %v460
    %v462 = vpop.xlane.xlu0 %461
    %v463 = vsel %vm117, %v424, 0.0
    %464 = vadd.xlane.f32.xlu0 %v463
    %v465 = vpop.xlane.xlu0 %464
    %v466 = vsel %vm117, %v426, 0.0
    %467 = vadd.xlane.f32.xlu0 %v466
    %v468 = vpop.xlane.xlu0 %467
    %v469 = vsel %vm117, %v428, 0.0
    %470 = vadd.xlane.f32.xlu0 %v469
    %v471 = vpop.xlane.xlu0 %470
    %v472 = vsel %vm117, %v430, 0.0
    %473 = vadd.xlane.f32.xlu0 %v472
    %v474 = vpop.xlane.xlu0 %473
    %v475 = vsel %vm117, %v432, 0.0
    %476 = vadd.xlane.f32.xlu0 %v475
    %v477 = vpop.xlane.xlu0 %476
    %v478 = vsel %vm117, %v434, 0.0
    %479 = vadd.xlane.f32.xlu0 %v478
    %v480 = vpop.xlane.xlu0 %479
    %v481 = vsel %vm117, %v436, 0.0
    %482 = vadd.xlane.f32.xlu0 %v481
    %v483 = vpop.xlane.xlu0 %482
    %v484 = vsel %vm117, %v438, 0.0
    %485 = vadd.xlane.f32.xlu0 %v484
    %v486 = vpop.xlane.xlu0 %485
    %v487 = vlog2.pop %v441
    %v488 = vmul.f32 %v487, 0.6931472
    %v489 = vlog2.pop %v444
    %v490 = vmul.f32 %v489, 0.6931472
    %v491 = vlog2.pop %v447
    %v492 = vmul.f32 %v491, 0.6931472
    %v493 = vlog2.pop %v450
    %v494 = vmul.f32 %v493, 0.6931472
    %v495 = vlog2.pop %v453
    %v496 = vmul.f32 %v495, 0.6931472
    %v497 = vlog2.pop %v456
    %v498 = vmul.f32 %v497, 0.6931472
    %v499 = vlog2.pop %v459
    %v500 = vmul.f32 %v499, 0.6931472
    %v501 = vlog2.pop %v462
    %v502 = vmul.f32 %v501, 0.6931472
    %v503 = vlog2.pop %v465
    %v504 = vmul.f32 %v503, 0.6931472
    %v505 = vlog2.pop %v468
    %v506 = vmul.f32 %v505, 0.6931472
    %v507 = vlog2.pop %v471
    %v508 = vmul.f32 %v507, 0.6931472
    %v509 = vlog2.pop %v474
    %v510 = vmul.f32 %v509, 0.6931472
    %v511 = vlog2.pop %v477
    %v512 = vmul.f32 %v511, 0.6931472
    %v513 = vlog2.pop %v480
    %v514 = vmul.f32 %v513, 0.6931472
    %v515 = vlog2.pop %v483
    %v516 = vmul.f32 %v515, 0.6931472
    %v517 = vlog2.pop %v486
    %v518 = vmul.f32 %v517, 0.6931472
    %v519 = vld [vmem:[%s80] sm:$0xff]
    %v520 = vld [vmem:[%s80 + $0x8] sm:$0xff]
    %v521 = vld [vmem:[%s80 + $0x10] sm:$0xff]
    %v522 = vld [vmem:[%s80 + $0x18] sm:$0xff]
    %v523 = vld [vmem:[%s80 + $0x20] sm:$0xff]
    %v524 = vld [vmem:[%s80 + $0x28] sm:$0xff]
    %v525 = vld [vmem:[%s80 + $0x30] sm:$0xff]
    %v526 = vld [vmem:[%s80 + $0x38] sm:$0xff]
    %v527 = vld [vmem:[%s80 + $0x40] sm:$0xff]
    %v528 = vld [vmem:[%s80 + $0x48] sm:$0xff]
    %v529 = vld [vmem:[%s80 + $0x50] sm:$0xff]
    %v530 = vld [vmem:[%s80 + $0x58] sm:$0xff]
    %v531 = vld [vmem:[%s80 + $0x60] sm:$0xff]
    %v532 = vld [vmem:[%s80 + $0x68] sm:$0xff]
    %v533 = vld [vmem:[%s80 + $0x70] sm:$0xff]
    %v534 = vld [vmem:[%s80 + $0x78] sm:$0xff]
    %v535 = vmul.f32 %v519, %v391
    %v536 = vmul.f32 %v520, %v392
    %v537 = vmul.f32 %v521, %v393
    %v538 = vmul.f32 %v522, %v394
    %v539 = vmul.f32 %v523, %v395
    %v540 = vmul.f32 %v524, %v396
    %v541 = vmul.f32 %v525, %v397
    %v542 = vmul.f32 %v526, %v398
    %v543 = vmul.f32 %v527, %v399
    %v544 = vmul.f32 %v528, %v400
    %v545 = vmul.f32 %v529, %v401
    %v546 = vmul.f32 %v530, %v402
    %v547 = vmul.f32 %v531, %v403
    %v548 = vmul.f32 %v532, %v404
    %v549 = vmul.f32 %v533, %v405
    %v550 = vmul.f32 %v534, %v406
    %v551 = vsel %vm117, %v535, 0.0
    %552 = vadd.xlane.f32.xlu0 %v551
    %v553 = vpop.xlane.xlu0 %552
    %v554 = vsel %vm117, %v536, 0.0
    %555 = vadd.xlane.f32.xlu0 %v554
    %v556 = vpop.xlane.xlu0 %555
    %v557 = vsel %vm117, %v537, 0.0
    %558 = vadd.xlane.f32.xlu0 %v557
    %v559 = vpop.xlane.xlu0 %558
    %v560 = vsel %vm117, %v538, 0.0
    %561 = vadd.xlane.f32.xlu0 %v560
    %v562 = vpop.xlane.xlu0 %561
    %v563 = vsel %vm117, %v539, 0.0
    %564 = vadd.xlane.f32.xlu0 %v563
    %v565 = vpop.xlane.xlu0 %564
    %v566 = vsel %vm117, %v540, 0.0
    %567 = vadd.xlane.f32.xlu0 %v566
    %v568 = vpop.xlane.xlu0 %567
    %v569 = vsel %vm117, %v541, 0.0
    %570 = vadd.xlane.f32.xlu0 %v569
    %v571 = vpop.xlane.xlu0 %570
    %v572 = vsel %vm117, %v542, 0.0
    %573 = vadd.xlane.f32.xlu0 %v572
    %v574 = vpop.xlane.xlu0 %573
    %v575 = vsel %vm117, %v543, 0.0
    %576 = vadd.xlane.f32.xlu0 %v575
    %v577 = vpop.xlane.xlu0 %576
    %v578 = vsel %vm117, %v544, 0.0
    %579 = vadd.xlane.f32.xlu0 %v578
    %v580 = vpop.xlane.xlu0 %579
    %v581 = vsel %vm117, %v545, 0.0
    %582 = vadd.xlane.f32.xlu0 %v581
    %v583 = vpop.xlane.xlu0 %582
    %v584 = vsel %vm117, %v546, 0.0
    %585 = vadd.xlane.f32.xlu0 %v584
    %v586 = vpop.xlane.xlu0 %585
    %v587 = vsel %vm117, %v547, 0.0
    %588 = vadd.xlane.f32.xlu0 %v587
    %v589 = vpop.xlane.xlu0 %588
    %v590 = vsel %vm117, %v548, 0.0
    %591 = vadd.xlane.f32.xlu0 %v590
    %v592 = vpop.xlane.xlu0 %591
    %v593 = vsel %vm117, %v549, 0.0
    %594 = vadd.xlane.f32.xlu0 %v593
    %v595 = vpop.xlane.xlu0 %594
    %v596 = vsel %vm117, %v550, 0.0
    %597 = vadd.xlane.f32.xlu0 %v596
    %v598 = vpop.xlane.xlu0 %597
    %v599 = vsel %vm117, %v519, 0.0
    %600 = vadd.xlane.f32.xlu0 %v599
    %v601 = vpop.xlane.xlu0 %600
    %v602 = vsel %vm117, %v520, 0.0
    %603 = vadd.xlane.f32.xlu0 %v602
    %v604 = vpop.xlane.xlu0 %603
    %v605 = vsel %vm117, %v521, 0.0
    %606 = vadd.xlane.f32.xlu0 %v605
    %v607 = vpop.xlane.xlu0 %606
    %v608 = vsel %vm117, %v522, 0.0
    %609 = vadd.xlane.f32.xlu0 %v608
    %v610 = vpop.xlane.xlu0 %609
    %v611 = vsel %vm117, %v523, 0.0
    %612 = vadd.xlane.f32.xlu0 %v611
    %v613 = vpop.xlane.xlu0 %612
    %v614 = vsel %vm117, %v524, 0.0
    %615 = vadd.xlane.f32.xlu0 %v614
    %v616 = vpop.xlane.xlu0 %615
    %v617 = vsel %vm117, %v525, 0.0
    %618 = vadd.xlane.f32.xlu0 %v617
    %v619 = vpop.xlane.xlu0 %618
    %v620 = vsel %vm117, %v526, 0.0
    %621 = vadd.xlane.f32.xlu0 %v620
    %v622 = vpop.xlane.xlu0 %621
    %v623 = vsel %vm117, %v527, 0.0
    %624 = vadd.xlane.f32.xlu0 %v623
    %v625 = vpop.xlane.xlu0 %624
    %v626 = vsel %vm117, %v528, 0.0
    %627 = vadd.xlane.f32.xlu0 %v626
    %v628 = vpop.xlane.xlu0 %627
    %v629 = vsel %vm117, %v529, 0.0
    %630 = vadd.xlane.f32.xlu0 %v629
    %v631 = vpop.xlane.xlu0 %630
    %v632 = vsel %vm117, %v530, 0.0
    %633 = vadd.xlane.f32.xlu0 %v632
    %v634 = vpop.xlane.xlu0 %633
    %v635 = vsel %vm117, %v531, 0.0
    %636 = vadd.xlane.f32.xlu0 %v635
    %v637 = vpop.xlane.xlu0 %636
    %v638 = vsel %vm117, %v532, 0.0
    %639 = vadd.xlane.f32.xlu0 %v638
    %v640 = vpop.xlane.xlu0 %639
    %v641 = vsel %vm117, %v533, 0.0
    %642 = vadd.xlane.f32.xlu0 %v641
    %v643 = vpop.xlane.xlu0 %642
    %v644 = vsel %vm117, %v534, 0.0
    %645 = vadd.xlane.f32.xlu0 %v644
    %v646 = vpop.xlane.xlu0 %645
    %v647 = vmul.f32 %v601, %v488
    %v648 = vmul.f32 %v604, %v490
    %v649 = vmul.f32 %v607, %v492
    %v650 = vmul.f32 %v610, %v494
    %v651 = vmul.f32 %v613, %v496
    %v652 = vmul.f32 %v616, %v498
    %v653 = vmul.f32 %v619, %v500
    %v654 = vmul.f32 %v622, %v502
    %v655 = vmul.f32 %v625, %v504
    %v656 = vmul.f32 %v628, %v506
    %v657 = vmul.f32 %v631, %v508
    %v658 = vmul.f32 %v634, %v510
    %v659 = vmul.f32 %v637, %v512
    %v660 = vmul.f32 %v640, %v514
    %v661 = vmul.f32 %v643, %v516
    %v662 = vmul.f32 %v646, %v518
    %v663 = vsub.f32 %v647, %v553
    %v664 = vsub.f32 %v648, %v556
    %v665 = vsub.f32 %v649, %v559
    %v666 = vsub.f32 %v650, %v562
    %v667 = vsub.f32 %v651, %v565
    %v668 = vsub.f32 %v652, %v568
    %v669 = vsub.f32 %v653, %v571
    %v670 = vsub.f32 %v654, %v574
    %v671 = vsub.f32 %v655, %v577
    %v672 = vsub.f32 %v656, %v580
    %v673 = vsub.f32 %v657, %v583
    %v674 = vsub.f32 %v658, %v586
    %v675 = vsub.f32 %v659, %v589
    %v676 = vsub.f32 %v660, %v592
    %v677 = vsub.f32 %v661, %v595
    %v678 = vsub.f32 %v662, %v598
    %s679 = sadd.s32 0, 0
    %s680 = smul.u32 %s679, 128
    %v681 = vlaneseq
    %v682 = vshrl.u32 %v681, 7
    %v683 = vadd.s32 %v682, 8
    %v684 = vadd.s32 %v682, 16
    %v685 = vadd.s32 %v682, 24
    %v686 = vadd.s32 %v682, 32
    %v687 = vadd.s32 %v682, 40
    %v688 = vadd.s32 %v682, 48
    %v689 = vadd.s32 %v682, 56
    %v690 = vadd.s32 %v682, 64
    %v691 = vadd.s32 %v682, 72
    %v692 = vadd.s32 %v682, 80
    %v693 = vadd.s32 %v682, 88
    %v694 = vadd.s32 %v682, 96
    %v695 = vadd.s32 %v682, 104
    %v696 = vadd.s32 %v682, 112
    %v697 = vadd.s32 %v682, 120
    %v698 = vstv %s680
    %v699 = vadd.s32 %v698, %v682
    %v700 = vadd.s32 %v698, %v683
    %v701 = vadd.s32 %v698, %v684
    %v702 = vadd.s32 %v698, %v685
    %v703 = vadd.s32 %v698, %v686
    %v704 = vadd.s32 %v698, %v687
    %v705 = vadd.s32 %v698, %v688
    %v706 = vadd.s32 %v698, %v689
    %v707 = vadd.s32 %v698, %v690
    %v708 = vadd.s32 %v698, %v691
    %v709 = vadd.s32 %v698, %v692
    %v710 = vadd.s32 %v698, %v693
    %v711 = vadd.s32 %v698, %v694
    %v712 = vadd.s32 %v698, %v695
    %v713 = vadd.s32 %v698, %v696
    %v714 = vadd.s32 %v698, %v697
    %vm715 = vcmp.lt.s32.totalorder %v699, 128
    %vm716 = vcmp.lt.s32.totalorder %v700, 128
    %vm717 = vcmp.lt.s32.totalorder %v701, 128
    %vm718 = vcmp.lt.s32.totalorder %v702, 128
    %vm719 = vcmp.lt.s32.totalorder %v703, 128
    %vm720 = vcmp.lt.s32.totalorder %v704, 128
    %vm721 = vcmp.lt.s32.totalorder %v705, 128
    %vm722 = vcmp.lt.s32.totalorder %v706, 128
    %vm723 = vcmp.lt.s32.totalorder %v707, 128
    %vm724 = vcmp.lt.s32.totalorder %v708, 128
    %vm725 = vcmp.lt.s32.totalorder %v709, 128
    %vm726 = vcmp.lt.s32.totalorder %v710, 128
    %vm727 = vcmp.lt.s32.totalorder %v711, 128
    %vm728 = vcmp.lt.s32.totalorder %v712, 128
    %vm729 = vcmp.lt.s32.totalorder %v713, 128
    %vm730 = vcmp.lt.s32.totalorder %v714, 128
    %vm731 = vcmp.eq.f32.partialorder %v519, 1.0
    %vm732 = vcmp.eq.f32.partialorder %v520, 1.0
    %vm733 = vcmp.eq.f32.partialorder %v521, 1.0
    %vm734 = vcmp.eq.f32.partialorder %v522, 1.0
    %vm735 = vcmp.eq.f32.partialorder %v523, 1.0
    %vm736 = vcmp.eq.f32.partialorder %v524, 1.0
    %vm737 = vcmp.eq.f32.partialorder %v525, 1.0
    %vm738 = vcmp.eq.f32.partialorder %v526, 1.0
    %vm739 = vcmp.eq.f32.partialorder %v527, 1.0
    %vm740 = vcmp.eq.f32.partialorder %v528, 1.0
    %vm741 = vcmp.eq.f32.partialorder %v529, 1.0
    %vm742 = vcmp.eq.f32.partialorder %v530, 1.0
    %vm743 = vcmp.eq.f32.partialorder %v531, 1.0
    %vm744 = vcmp.eq.f32.partialorder %v532, 1.0
    %vm745 = vcmp.eq.f32.partialorder %v533, 1.0
    %vm746 = vcmp.eq.f32.partialorder %v534, 1.0
    %vm747 = vmand %vm731, %vm715
    %vm748 = vmand %vm732, %vm716
    %vm749 = vmand %vm733, %vm717
    %vm750 = vmand %vm734, %vm718
    %vm751 = vmand %vm735, %vm719
    %vm752 = vmand %vm736, %vm720
    %vm753 = vmand %vm737, %vm721
    %vm754 = vmand %vm738, %vm722
    %vm755 = vmand %vm739, %vm723
    %vm756 = vmand %vm740, %vm724
    %vm757 = vmand %vm741, %vm725
    %vm758 = vmand %vm742, %vm726
    %vm759 = vmand %vm743, %vm727
    %vm760 = vmand %vm744, %vm728
    %vm761 = vmand %vm745, %vm729
    %vm762 = vmand %vm746, %vm730
    %v763 = vsel %vm747, %v663, 0.0
    %v764 = vsel %vm748, %v664, 0.0
    %v765 = vsel %vm749, %v665, 0.0
    %v766 = vsel %vm750, %v666, 0.0
    %v767 = vsel %vm751, %v667, 0.0
    %v768 = vsel %vm752, %v668, 0.0
    %v769 = vsel %vm753, %v669, 0.0
    %v770 = vsel %vm754, %v670, 0.0
    %v771 = vsel %vm755, %v671, 0.0
    %v772 = vsel %vm756, %v672, 0.0
    %v773 = vsel %vm757, %v673, 0.0
    %v774 = vsel %vm758, %v674, 0.0
    %v775 = vsel %vm759, %v675, 0.0
    %v776 = vsel %vm760, %v676, 0.0
    %v777 = vsel %vm761, %v677, 0.0
    %v778 = vsel %vm762, %v678, 0.0
    %795 = vrot.lane.b32.xlu0 %v763, 97
    %v796 = vpop.permute.xlu0 %795
    %797 = vrot.lane.b32.xlu0 %v764, 97
    %v798 = vpop.permute.xlu0 %797
    %799 = vrot.lane.b32.xlu0 %v765, 97
    %v800 = vpop.permute.xlu0 %799
    %801 = vrot.lane.b32.xlu0 %v766, 97
    %v802 = vpop.permute.xlu0 %801
    %803 = vrot.lane.b32.xlu0 %v767, 97
    %v804 = vpop.permute.xlu0 %803
    %805 = vrot.lane.b32.xlu0 %v768, 97
    %v806 = vpop.permute.xlu0 %805
    %807 = vrot.lane.b32.xlu0 %v769, 97
    %v808 = vpop.permute.xlu0 %807
    %809 = vrot.lane.b32.xlu0 %v770, 97
    %v810 = vpop.permute.xlu0 %809
    %811 = vrot.lane.b32.xlu0 %v771, 97
    %v812 = vpop.permute.xlu0 %811
    %813 = vrot.lane.b32.xlu0 %v772, 97
    %v814 = vpop.permute.xlu0 %813
    %815 = vrot.lane.b32.xlu0 %v773, 97
    %v816 = vpop.permute.xlu0 %815
    %817 = vrot.lane.b32.xlu0 %v774, 97
    %v818 = vpop.permute.xlu0 %817
    %819 = vrot.lane.b32.xlu0 %v775, 97
    %v820 = vpop.permute.xlu0 %819
    %821 = vrot.lane.b32.xlu0 %v776, 97
    %v822 = vpop.permute.xlu0 %821
    %823 = vrot.lane.b32.xlu0 %v777, 97
    %v824 = vpop.permute.xlu0 %823
    %825 = vrot.lane.b32.xlu0 %v778, 97
    %v826 = vpop.permute.xlu0 %825
    %vm843 = vcmask 7168
    %v844 = vsel %vm843, %v796, 0.0
    %v845 = vsel %vm843, %v798, 0.0
    %v846 = vadd.f32 %v844, %v845
    %v847 = vsel %vm843, %v800, 0.0
    %v848 = vadd.f32 %v846, %v847
    %v849 = vsel %vm843, %v802, 0.0
    %v850 = vadd.f32 %v848, %v849
    %v851 = vsel %vm843, %v804, 0.0
    %v852 = vadd.f32 %v850, %v851
    %v853 = vsel %vm843, %v806, 0.0
    %v854 = vadd.f32 %v852, %v853
    %v855 = vsel %vm843, %v808, 0.0
    %v856 = vadd.f32 %v854, %v855
    %v857 = vsel %vm843, %v810, 0.0
    %v858 = vadd.f32 %v856, %v857
    %v859 = vsel %vm843, %v812, 0.0
    %v860 = vadd.f32 %v858, %v859
    %v861 = vsel %vm843, %v814, 0.0
    %v862 = vadd.f32 %v860, %v861
    %v863 = vsel %vm843, %v816, 0.0
    %v864 = vadd.f32 %v862, %v863
    %v865 = vsel %vm843, %v818, 0.0
    %v866 = vadd.f32 %v864, %v865
    %v867 = vsel %vm843, %v820, 0.0
    %v868 = vadd.f32 %v866, %v867
    %v869 = vsel %vm843, %v822, 0.0
    %v870 = vadd.f32 %v868, %v869
    %v871 = vsel %vm843, %v824, 0.0
    %v872 = vadd.f32 %v870, %v871
    %v873 = vsel %vm843, %v826, 0.0
    %v874 = vadd.f32 %v872, %v873
    %875 = vadd.xlane.f32.xlu0 %v874
    %v876 = vpop.xlane.xlu0 %875
    %v877 = vrot.slane %v876, 4
    %v878 = vadd.f32 %v876, %v877
    %v879 = vrot.slane %v878, 2
    %v880 = vadd.f32 %v878, %v879
    %v881 = vrot.slane %v880, 1
    %v882 = vadd.f32 %v880, %v881
    %s883 = vtos %v882
    %v884 = vsel %vm747, 1.0, 0.0
    %v885 = vsel %vm748, 1.0, 0.0
    %v886 = vsel %vm749, 1.0, 0.0
    %v887 = vsel %vm750, 1.0, 0.0
    %v888 = vsel %vm751, 1.0, 0.0
    %v889 = vsel %vm752, 1.0, 0.0
    %v890 = vsel %vm753, 1.0, 0.0
    %v891 = vsel %vm754, 1.0, 0.0
    %v892 = vsel %vm755, 1.0, 0.0
    %v893 = vsel %vm756, 1.0, 0.0
    %v894 = vsel %vm757, 1.0, 0.0
    %v895 = vsel %vm758, 1.0, 0.0
    %v896 = vsel %vm759, 1.0, 0.0
    %v897 = vsel %vm760, 1.0, 0.0
    %v898 = vsel %vm761, 1.0, 0.0
    %v899 = vsel %vm762, 1.0, 0.0
    %916 = vrot.lane.b32.xlu0 %v884, 97
    %v917 = vpop.permute.xlu0 %916
    %918 = vrot.lane.b32.xlu0 %v885, 97
    %v919 = vpop.permute.xlu0 %918
    %920 = vrot.lane.b32.xlu0 %v886, 97
    %v921 = vpop.permute.xlu0 %920
    %922 = vrot.lane.b32.xlu0 %v887, 97
    %v923 = vpop.permute.xlu0 %922
    %924 = vrot.lane.b32.xlu0 %v888, 97
    %v925 = vpop.permute.xlu0 %924
    %926 = vrot.lane.b32.xlu0 %v889, 97
    %v927 = vpop.permute.xlu0 %926
    %928 = vrot.lane.b32.xlu0 %v890, 97
    %v929 = vpop.permute.xlu0 %928
    %930 = vrot.lane.b32.xlu0 %v891, 97
    %v931 = vpop.permute.xlu0 %930
    %932 = vrot.lane.b32.xlu0 %v892, 97
    %v933 = vpop.permute.xlu0 %932
    %934 = vrot.lane.b32.xlu0 %v893, 97
    %v935 = vpop.permute.xlu0 %934
    %936 = vrot.lane.b32.xlu0 %v894, 97
    %v937 = vpop.permute.xlu0 %936
    %938 = vrot.lane.b32.xlu0 %v895, 97
    %v939 = vpop.permute.xlu0 %938
    %940 = vrot.lane.b32.xlu0 %v896, 97
    %v941 = vpop.permute.xlu0 %940
    %942 = vrot.lane.b32.xlu0 %v897, 97
    %v943 = vpop.permute.xlu0 %942
    %944 = vrot.lane.b32.xlu0 %v898, 97
    %v945 = vpop.permute.xlu0 %944
    %946 = vrot.lane.b32.xlu0 %v899, 97
    %v947 = vpop.permute.xlu0 %946
    %v964 = vsel %vm843, %v917, 0.0
    %v965 = vsel %vm843, %v919, 0.0
    %v966 = vadd.f32 %v964, %v965
    %v967 = vsel %vm843, %v921, 0.0
    %v968 = vadd.f32 %v966, %v967
    %v969 = vsel %vm843, %v923, 0.0
    %v970 = vadd.f32 %v968, %v969
    %v971 = vsel %vm843, %v925, 0.0
    %v972 = vadd.f32 %v970, %v971
    %v973 = vsel %vm843, %v927, 0.0
    %v974 = vadd.f32 %v972, %v973
    %v975 = vsel %vm843, %v929, 0.0
    %v976 = vadd.f32 %v974, %v975
    %v977 = vsel %vm843, %v931, 0.0
    %v978 = vadd.f32 %v976, %v977
    %v979 = vsel %vm843, %v933, 0.0
    %v980 = vadd.f32 %v978, %v979
    %v981 = vsel %vm843, %v935, 0.0
    %v982 = vadd.f32 %v980, %v981
    %v983 = vsel %vm843, %v937, 0.0
    %v984 = vadd.f32 %v982, %v983
    %v985 = vsel %vm843, %v939, 0.0
    %v986 = vadd.f32 %v984, %v985
    %v987 = vsel %vm843, %v941, 0.0
    %v988 = vadd.f32 %v986, %v987
    %v989 = vsel %vm843, %v943, 0.0
    %v990 = vadd.f32 %v988, %v989
    %v991 = vsel %vm843, %v945, 0.0
    %v992 = vadd.f32 %v990, %v991
    %v993 = vsel %vm843, %v947, 0.0
    %v994 = vadd.f32 %v992, %v993
    %995 = vadd.xlane.f32.xlu0 %v994
    %v996 = vpop.xlane.xlu0 %995
    %v997 = vrot.slane %v996, 4
    %v998 = vadd.f32 %v996, %v997
    %v999 = vrot.slane %v998, 2
    %v1000 = vadd.f32 %v998, %v999
    %v1001 = vrot.slane %v1000, 1
    %v1002 = vadd.f32 %v1000, %v1001
    %s1003 = vtos %v1002
    %s1004 = sld [smem:[#allocation2]]
    %s1005 = sadd.f32 %s1004, %s883
    %s1006 = scalar_lea.smem [#allocation2], 0
    %1007 = sst [smem:[%s1006]] %s1005
    %s1008 = sld [smem:[#allocation2 + $0x1]]
    %s1009 = sadd.f32 %s1008, %s1003
    %s1010 = scalar_lea.smem [#allocation2], 1
    %1011 = sst [smem:[%s1010]] %s1009
    // Predicated region
    $region22: #{tpu_custom_call.1} parent=1 // pred_check
      %p1012 = pneg %p85
    $region23: #{tpu_custom_call.1} parent=1 // pred_check_branch
      %1014 = sbr.rel (%p1012) target = $region25
    $region24: #{tpu_custom_call.1} parent=1 // pred_region
      %s1015 = sld [smem:[#allocation2]]
      %v1016 = vstv %s1015
      %1017 = vst [vmem:[#allocation3] sm:$0xff] %v1016
      %s1018 = sld [smem:[#allocation2 + $0x1]]
      %v1019 = vstv %s1018
      %1020 = vst [vmem:[#allocation5] sm:$0xff] %v1019
    $region25: #{tpu_custom_call.1} parent=1 // pred_fallthru
      _
    // Predicated region
    $region26: #{tpu_custom_call.1} parent=1 // pred_check
      _
    $region27: #{tpu_custom_call.1} parent=1 // pred_check_branch
      %1022 = sbr.rel (0) target = $region29
    $region28: #{tpu_custom_call.1} parent=1 // pred_region
      %1024 = vsyncadd [#allocation4], 0
      %s1026 = sshll.u32 [#allocation3], 4
      %s1027 = int_to_ptr.vmem [resolvable:$true] %s1026
      %s1028 = sshll.u32 %s4, 4
      %s1029 = int_to_ptr.hbm [resolvable:$true] %s1028
      %1031 = dma.vmem_to_hbm [thread:$0]  %s1027, 128, %s1029, [#allocation4]
    $region29: #{tpu_custom_call.1} parent=1 // pred_fallthru
      _
    // Predicated region
    $region30: #{tpu_custom_call.1} parent=1 // pred_check
      _
    $region31: #{tpu_custom_call.1} parent=1 // pred_check_branch
      %1033 = sbr.rel (0) target = $region33
    $region32: #{tpu_custom_call.1} parent=1 // pred_region
      %1035 = vsyncadd [#allocation6], 0
      %s1037 = sshll.u32 [#allocation5], 4
      %s1038 = int_to_ptr.vmem [resolvable:$true] %s1037
      %s1039 = sshll.u32 %s5, 4
      %s1040 = int_to_ptr.hbm [resolvable:$true] %s1039
      %1042 = dma.vmem_to_hbm [thread:$0]  %s1038, 128, %s1040, [#allocation6]
    $region33: #{tpu_custom_call.1} parent=1 // pred_fallthru
      _
    // Predicated region
    $region34: #{tpu_custom_call.1} parent=1 // pred_check
      _
    $region35: #{tpu_custom_call.1} parent=1 // pred_check_branch
      %1044 = sbr.rel (0) target = $region37
    $region36: #{tpu_custom_call.1} parent=1 // pred_region
      %1046 = dma.done [#allocation4], 128
    $region37: #{tpu_custom_call.1} parent=1 // pred_fallthru
      _
    // Predicated region
    $region38: #{tpu_custom_call.1} parent=1 // pred_check
      _
    $region39: #{tpu_custom_call.1} parent=1 // pred_check_branch
      %1048 = sbr.rel (0) target = $region41
    $region40: #{tpu_custom_call.1} parent=1 // pred_region
      %1050 = dma.done [#allocation6], 128
    $region41: #{tpu_custom_call.1} parent=1 // pred_fallthru
      _
    %1051 = vsyncpa [#allocation4], 1
    %1052 = vsyncpa [#allocation6], 1

</llo_original>
